<compile_context>
chip_gen: v7x
topology: tpu7x:2x2x1
jax: 0.10.0
libtpu: 0.0.40
codegen_flags: <defaults>
</compile_context>

<pallas_src>
import jax
import jax.numpy as jnp
from jax.experimental import pallas as pl
from jax.experimental.pallas import tpu as pltpu


LANES = 128          # lane-dense feature width for every activation / weight slice
BIAS_ROW = LANES     # row of the packed slab that carries the bias
SLAB_ROWS = LANES + 8  # 136: weight rows 0:128, bias row 128, rows 129:136 zero pad


def mlp_kernel(x_ref, p_ref, o_ref):
    """x_ref: (N_pad, 128) f32, lanes >= 16 are zero.
       p_ref: (4, 136, 128) f32 packed (weight | bias) slab per layer.
       o_ref: (N_pad, 128) f32, lanes >= 16 come out exactly zero."""
    h = x_ref[...]
    n_layers = p_ref.shape[0]
    for l in range(n_layers):                      # static unroll (4 layers)
        slab = p_ref[l]                            # (136, 128) for this layer
        w = slab[0:LANES, :]                       # (128, 128) zero-padded weight
        b = slab[BIAS_ROW:BIAS_ROW + 1, :]         # (1, 128)   zero-padded bias
        h = jnp.dot(h, w, preferred_element_type=jnp.float32) + b
        if l < n_layers - 1:
            h = jnp.tanh(h)
    o_ref[...] = h.astype(o_ref.dtype)


def pack_params(params):
    """Pack [(W(in,out), b(1,out)), ...] into a single (L, 136, 128) f32 slab."""
    n_layers = len(params)
    slab = jnp.zeros((n_layers, SLAB_ROWS, LANES), jnp.float32)
    for l, (w, b) in enumerate(params):
        in_f, out_f = w.shape
        slab = slab.at[l, :in_f, :out_f].set(w.astype(jnp.float32))
        slab = slab.at[l, BIAS_ROW, :out_f].set(b.reshape(-1).astype(jnp.float32))
    return slab


def mlp_forward(x, params):
    N, d_in = x.shape
    d_out = params[-1][0].shape[1]

    # Pad batch to a multiple of 8 sublanes (70 -> 72) and features to 128 lanes.
    n_pad = ((N + 7) // 8) * 8
    x_pad = jnp.zeros((n_pad, LANES), jnp.float32).at[:N, :d_in].set(x)

    # Single packed parameter slab (in real use this would be built once and
    # reused across calls, not rebuilt per forward).
    p_slab = pack_params(params)

    vmem = pl.BlockSpec(memory_space=pltpu.MemorySpace.VMEM)
    out = pl.pallas_call(
        mlp_kernel,
        out_shape=jax.ShapeDtypeStruct((n_pad, LANES), jnp.float32),
        in_specs=[vmem, vmem],
        out_specs=vmem,
    )(x_pad, p_slab)

    return out[:N, :d_out]


def init_linear(key, in_f, out_f):
    # Deterministic init mimicking PyTorch Linear default: U(-1/sqrt(in), 1/sqrt(in)).
    k_w, k_b = jax.random.split(key)
    bound = 1.0 / jnp.sqrt(jnp.float32(in_f))
    w = jax.random.uniform(k_w, (in_f, out_f), jnp.float32, -bound, bound)
    b = jax.random.uniform(k_b, (1, out_f), jnp.float32, -bound, bound)
    return w, b


def reference_forward(x, params):
    h = x
    for i, (w, b) in enumerate(params):
        h = h @ w + b
        if i < len(params) - 1:
            h = jnp.tanh(h)
    return h


if __name__ == "__main__":
    key = jax.random.PRNGKey(0)
    kx, k1, k2, k3, k4 = jax.random.split(key, 5)

    x = jax.random.normal(kx, (70, 16), jnp.float32)

    params = [
        init_linear(k1, 16, 32),
        init_linear(k2, 32, 48),
        init_linear(k3, 48, 32),
        init_linear(k4, 32, 16),
    ]

    out = mlp_forward(x, params)
    out = jax.block_until_ready(out)

    ref = reference_forward(x, params)
    assert out.shape == (70, 16), out.shape
    assert jnp.allclose(out, ref, atol=1e-5, rtol=1e-5), float(jnp.max(jnp.abs(out - ref)))

    print("KERNEL_OK")
</pallas_src>

<mosaic_0001>
module attributes {stable_mosaic.version = 11 : i64} {
  func.func @mlp_kernel(%arg0: memref<72x128xf32, #tpu.memory_space<vmem>>, %arg1: memref<4x136x128xf32, #tpu.memory_space<vmem>>, %arg2: memref<72x128xf32, #tpu.memory_space<vmem>>) attributes {dimension_semantics = [], scalar_prefetch = 0 : i64, scratch_operands = 0 : i64, tpu.core_type = #tpu.core_type<tc>} {
    %c0 = arith.constant 0 : index
    %c0_0 = arith.constant 0 : index
    %0 = vector.load %arg0[%c0, %c0_0] : memref<72x128xf32, #tpu.memory_space<vmem>>, vector<72x128xf32>
    %c0_1 = arith.constant 0 : index
    %c0_2 = arith.constant 0 : index
    %c0_3 = arith.constant 0 : index
    %1 = vector.load %arg1[%c0_1, %c0_2, %c0_3] : memref<4x136x128xf32, #tpu.memory_space<vmem>>, vector<1x136x128xf32>
    %2 = vector.shape_cast %1 : vector<1x136x128xf32> to vector<136x128xf32>
    %3 = vector.extract_strided_slice %2 {offsets = [0, 0], sizes = [128, 128], strides = [1, 1]} : vector<136x128xf32> to vector<128x128xf32>
    %4 = vector.extract_strided_slice %2 {offsets = [128, 0], sizes = [1, 128], strides = [1, 1]} : vector<136x128xf32> to vector<1x128xf32>
    %cst = arith.constant dense<0.000000e+00> : vector<72x128xf32>
    %5 = tpu.matmul %0, %3, %cst {dimension_numbers = #tpu.dot_dimension_numbers<[1], [0], [0], [1], [0, 0, 1, 1], [], []>} : vector<72x128xf32>, vector<128x128xf32>, vector<72x128xf32> -> vector<72x128xf32>
    %6 = vector.broadcast %4 : vector<1x128xf32> to vector<72x128xf32>
    %7 = arith.addf %5, %6 : vector<72x128xf32>
    %8 = math.tanh %7 : vector<72x128xf32>
    %c1 = arith.constant 1 : index
    %c0_4 = arith.constant 0 : index
    %c0_5 = arith.constant 0 : index
    %9 = vector.load %arg1[%c1, %c0_4, %c0_5] : memref<4x136x128xf32, #tpu.memory_space<vmem>>, vector<1x136x128xf32>
    %10 = vector.shape_cast %9 : vector<1x136x128xf32> to vector<136x128xf32>
    %11 = vector.extract_strided_slice %10 {offsets = [0, 0], sizes = [128, 128], strides = [1, 1]} : vector<136x128xf32> to vector<128x128xf32>
    %12 = vector.extract_strided_slice %10 {offsets = [128, 0], sizes = [1, 128], strides = [1, 1]} : vector<136x128xf32> to vector<1x128xf32>
    %cst_6 = arith.constant dense<0.000000e+00> : vector<72x128xf32>
    %13 = tpu.matmul %8, %11, %cst_6 {dimension_numbers = #tpu.dot_dimension_numbers<[1], [0], [0], [1], [0, 0, 1, 1], [], []>} : vector<72x128xf32>, vector<128x128xf32>, vector<72x128xf32> -> vector<72x128xf32>
    %14 = vector.broadcast %12 : vector<1x128xf32> to vector<72x128xf32>
    %15 = arith.addf %13, %14 : vector<72x128xf32>
    %16 = math.tanh %15 : vector<72x128xf32>
    %c2 = arith.constant 2 : index
    %c0_7 = arith.constant 0 : index
    %c0_8 = arith.constant 0 : index
    %17 = vector.load %arg1[%c2, %c0_7, %c0_8] : memref<4x136x128xf32, #tpu.memory_space<vmem>>, vector<1x136x128xf32>
    %18 = vector.shape_cast %17 : vector<1x136x128xf32> to vector<136x128xf32>
    %19 = vector.extract_strided_slice %18 {offsets = [0, 0], sizes = [128, 128], strides = [1, 1]} : vector<136x128xf32> to vector<128x128xf32>
    %20 = vector.extract_strided_slice %18 {offsets = [128, 0], sizes = [1, 128], strides = [1, 1]} : vector<136x128xf32> to vector<1x128xf32>
    %cst_9 = arith.constant dense<0.000000e+00> : vector<72x128xf32>
    %21 = tpu.matmul %16, %19, %cst_9 {dimension_numbers = #tpu.dot_dimension_numbers<[1], [0], [0], [1], [0, 0, 1, 1], [], []>} : vector<72x128xf32>, vector<128x128xf32>, vector<72x128xf32> -> vector<72x128xf32>
    %22 = vector.broadcast %20 : vector<1x128xf32> to vector<72x128xf32>
    %23 = arith.addf %21, %22 : vector<72x128xf32>
    %24 = math.tanh %23 : vector<72x128xf32>
    %c3 = arith.constant 3 : index
    %c0_10 = arith.constant 0 : index
    %c0_11 = arith.constant 0 : index
    %25 = vector.load %arg1[%c3, %c0_10, %c0_11] : memref<4x136x128xf32, #tpu.memory_space<vmem>>, vector<1x136x128xf32>
    %26 = vector.shape_cast %25 : vector<1x136x128xf32> to vector<136x128xf32>
    %27 = vector.extract_strided_slice %26 {offsets = [0, 0], sizes = [128, 128], strides = [1, 1]} : vector<136x128xf32> to vector<128x128xf32>
    %28 = vector.extract_strided_slice %26 {offsets = [128, 0], sizes = [1, 128], strides = [1, 1]} : vector<136x128xf32> to vector<1x128xf32>
    %cst_12 = arith.constant dense<0.000000e+00> : vector<72x128xf32>
    %29 = tpu.matmul %24, %27, %cst_12 {dimension_numbers = #tpu.dot_dimension_numbers<[1], [0], [0], [1], [0, 0, 1, 1], [], []>} : vector<72x128xf32>, vector<128x128xf32>, vector<72x128xf32> -> vector<72x128xf32>
    %30 = vector.broadcast %28 : vector<1x128xf32> to vector<72x128xf32>
    %31 = arith.addf %29, %30 : vector<72x128xf32>
    %c0_13 = arith.constant 0 : index
    %c0_14 = arith.constant 0 : index
    %32 = vector.load %arg2[%c0_13, %c0_14] : memref<72x128xf32, #tpu.memory_space<vmem>>, vector<72x128xf32>
    tpu.vector_store %arg2[%c0_13, %c0_14], %31 {strides = array<i32>} : memref<72x128xf32, #tpu.memory_space<vmem>>, vector<72x128xf32>,
    return
  }
}

</mosaic_0001>

<llo_original>
// kernel: tpu_custom_call.1
$region0: #{tpu_custom_call.1}
  #allocation0 [shape = 'u32[]', space=smem, size = 0x4, offset = 0x4, fixed_abs, tag = 'smem constant byte address 0x4 - core index']
  #allocation1 [shape = 'u32[144,128]{1,0:T(1,128)}', space=vmem, size = 0x12000, scoped, tag = 'internal scratch']
  %s0 = inlined_call_operand.hbm [shape: f32[72,128], index: 0, kind: input, shape index: {}]
  %s1 = inlined_call_operand.hbm [shape: f32[4,136,128], index: 1, kind: input, shape index: {}]
  %s2 = inlined_call_operand.hbm [shape: f32[72,128], index: 2, kind: output, shape index: {}]
  %s3 = sld [smem:[#allocation0]]
  $region26: #{tpu_custom_call.1} parent=0
    _
  %s5 = ssub.s32 1, %s3
  %s6 = scalar_select 0, %s5, %s3
  $region1: #{tpu_custom_call.1} parent=0
    #allocation2 [shape = 'u8[36864]{0}', space=vmem, size = 0x9000, scoped, tag = 'input window, operand 0, single buffered']
    #allocation3 [shape = 's32[1]{0}', space=sflag, size = 0x4, scoped, tag = 'scoped memory for tpu_custom_call.1']
    #allocation4 [shape = 's32[1]{0}', space=sflag, size = 0x4, scoped, tag = 'scoped memory for tpu_custom_call.1']
    #allocation5 [shape = 'u8[278528]{0}', space=vmem, size = 0x44000, scoped, tag = 'input window, operand 1, single buffered']
    #allocation6 [shape = 's32[1]{0}', space=sflag, size = 0x4, scoped, tag = 'scoped memory for tpu_custom_call.1']
    #allocation7 [shape = 'u8[36864]{0}', space=vmem, size = 0x9000, scoped, tag = 'output window, operand 0, single buffered']
    %7 = vsyncpa [#allocation3], 0
    %8 = vsyncpa [#allocation6], 0
    %9 = vsyncpa [#allocation4], 0
    // Predicated region
    $region2: #{tpu_custom_call.1} parent=1 // pred_check
      _
    $region3: #{tpu_custom_call.1} parent=1 // pred_check_branch
      %11 = sbr.rel (0) target = $region5
    $region4: #{tpu_custom_call.1} parent=1 // pred_region
      %s13 = ssub.s32 1152, 1152
      %14 = vsyncadd [#allocation3], %s13
      %s15 = sshll.u32 [#allocation2], 4
      %s16 = int_to_ptr.vmem [resolvable:$true] %s15
      %21 = dma.hbm_to_vmem [thread:$0]  %s0, 1152, %s16, [#allocation3], 128, 128, 8
    $region5: #{tpu_custom_call.1} parent=1 // pred_fallthru
      _
    // Predicated region
    $region6: #{tpu_custom_call.1} parent=1 // pred_check
      _
    $region7: #{tpu_custom_call.1} parent=1 // pred_check_branch
      %23 = sbr.rel (0) target = $region9
    $region8: #{tpu_custom_call.1} parent=1 // pred_region
      %s25 = ssub.s32 8704, 8704
      %26 = vsyncadd [#allocation6], %s25
      %s27 = sshll.u32 [#allocation5], 4
      %s28 = int_to_ptr.vmem [resolvable:$true] %s27
      %33 = dma.hbm_to_vmem [thread:$0]  %s1, 8704, %s28, [#allocation6], 128, 128, 8
    $region9: #{tpu_custom_call.1} parent=1 // pred_fallthru
      _
    // Predicated region
    $region10: #{tpu_custom_call.1} parent=1 // pred_check
      _
    $region11: #{tpu_custom_call.1} parent=1 // pred_check_branch
      %35 = sbr.rel (0) target = $region13
    $region12: #{tpu_custom_call.1} parent=1 // pred_region
      %36 = dma.done [#allocation3], 1152
    $region13: #{tpu_custom_call.1} parent=1 // pred_fallthru
      _
    // Predicated region
    $region14: #{tpu_custom_call.1} parent=1 // pred_check
      _
    $region15: #{tpu_custom_call.1} parent=1 // pred_check_branch
      %38 = sbr.rel (0) target = $region17
    $region16: #{tpu_custom_call.1} parent=1 // pred_region
      %39 = dma.done [#allocation6], 8704
    $region17: #{tpu_custom_call.1} parent=1 // pred_fallthru
      _
    %v40 = vld [vmem:[#allocation2] sm:$0xff]
    %v41 = vld [vmem:[#allocation2 + $0x8] sm:$0xff]
    %v42 = vld [vmem:[#allocation2 + $0x10] sm:$0xff]
    %v43 = vld [vmem:[#allocation2 + $0x18] sm:$0xff]
    %v44 = vld [vmem:[#allocation2 + $0x20] sm:$0xff]
    %v45 = vld [vmem:[#allocation2 + $0x28] sm:$0xff]
    %v46 = vld [vmem:[#allocation2 + $0x30] sm:$0xff]
    %v47 = vld [vmem:[#allocation2 + $0x38] sm:$0xff]
    %v48 = vld [vmem:[#allocation2 + $0x40] sm:$0xff]
    %v49 = vld [vmem:[#allocation5] sm:$0xff]
    %v50 = vld [vmem:[#allocation5 + $0x8] sm:$0xff]
    %v51 = vld [vmem:[#allocation5 + $0x10] sm:$0xff]
    %v52 = vld [vmem:[#allocation5 + $0x18] sm:$0xff]
    %v53 = vld [vmem:[#allocation5 + $0x20] sm:$0xff]
    %v54 = vld [vmem:[#allocation5 + $0x28] sm:$0xff]
    %v55 = vld [vmem:[#allocation5 + $0x30] sm:$0xff]
    %v56 = vld [vmem:[#allocation5 + $0x38] sm:$0xff]
    %v57 = vld [vmem:[#allocation5 + $0x40] sm:$0xff]
    %v58 = vld [vmem:[#allocation5 + $0x48] sm:$0xff]
    %v59 = vld [vmem:[#allocation5 + $0x50] sm:$0xff]
    %v60 = vld [vmem:[#allocation5 + $0x58] sm:$0xff]
    %v61 = vld [vmem:[#allocation5 + $0x60] sm:$0xff]
    %v62 = vld [vmem:[#allocation5 + $0x68] sm:$0xff]
    %v63 = vld [vmem:[#allocation5 + $0x70] sm:$0xff]
    %v64 = vld [vmem:[#allocation5 + $0x78] sm:$0xff]
    %v65 = vld [vmem:[#allocation5 + $0x80] sm:$0xff]
    %v66 = vlaneseq
    %v67 = vshrl.u32 %v66, 7
    %v68 = vsub.s32 0, %v67
    %v69 = vrot.slane %v65, %v68
    %70 = vmatprep.subr.mxu0 0.0
    %71 = vmatpush1.msra.mxu0 %v49
    %72 = vmatprep.subr.mxu0 0.0
    %73 = vmatpush1.msra.mxu0 %v50
    %74 = vmatprep.subr.mxu0 0.0
    %75 = vmatpush1.msra.mxu0 %v51
    %76 = vmatprep.subr.mxu0 0.0
    %77 = vmatpush1.msra.mxu0 %v52
    %78 = vmatprep.subr.mxu0 0.0
    %79 = vmatpush1.msra.mxu0 %v53
    %80 = vmatprep.subr.mxu0 0.0
    %81 = vmatpush1.msra.mxu0 %v54
    %82 = vmatprep.subr.mxu0 0.0
    %83 = vmatpush1.msra.mxu0 %v55
    %84 = vmatprep.subr.mxu0 0.0
    %85 = vmatpush1.msra.mxu0 %v56
    %86 = vmatprep.subr.mxu0 0.0
    %87 = vmatpush1.msra.mxu0 %v57
    %88 = vmatprep.subr.mxu0 0.0
    %89 = vmatpush1.msra.mxu0 %v58
    %90 = vmatprep.subr.mxu0 0.0
    %91 = vmatpush1.msra.mxu0 %v59
    %92 = vmatprep.subr.mxu0 0.0
    %93 = vmatpush1.msra.mxu0 %v60
    %94 = vmatprep.subr.mxu0 0.0
    %95 = vmatpush1.msra.mxu0 %v61
    %96 = vmatprep.subr.mxu0 0.0
    %97 = vmatpush1.msra.mxu0 %v62
    %98 = vmatprep.subr.mxu0 0.0
    %99 = vmatpush1.msra.mxu0 %v63
    %100 = vmatprep.subr.mxu0 0.0
    %101 = vmatpush1.msra.mxu0 %v64
    %102 = vmatprep.subr.mxu0 0.0
    %103 = vmatpush1.msra.mxu0 0.0
    %104 = vmatprep.subr.mxu0 0.0
    %105 = vmatpush1.msra.mxu0 0.0
    %106 = vmatprep.subr.mxu0 0.0
    %107 = vmatpush1.msra.mxu0 0.0
    %108 = vmatprep.subr.mxu0 0.0
    %109 = vmatpush1.msra.mxu0 0.0
    %110 = vmatprep.subr.mxu0 0.0
    %111 = vmatpush1.msra.mxu0 0.0
    %112 = vmatprep.subr.mxu0 0.0
    %113 = vmatpush1.msra.mxu0 0.0
    %114 = vmatprep.subr.mxu0 0.0
    %115 = vmatpush1.msra.mxu0 0.0
    %116 = vmatprep.subr.mxu0 0.0
    %117 = vmatpush1.msra.mxu0 0.0
    %118 = vmatprep.subr.mxu0 0.0
    %119 = vmatpush1.msra.mxu0 0.0
    %120 = vmatprep.subr.mxu0 0.0
    %121 = vmatpush1.msra.mxu0 0.0
    %122 = vmatprep.subr.mxu0 0.0
    %123 = vmatpush1.msra.mxu0 0.0
    %124 = vmatprep.subr.mxu0 0.0
    %125 = vmatpush1.msra.mxu0 0.0
    %126 = vmatprep.subr.mxu0 0.0
    %127 = vmatpush1.msra.mxu0 0.0
    %128 = vmatprep.subr.mxu0 0.0
    %129 = vmatpush1.msra.mxu0 0.0
    %130 = vmatprep.subr.mxu0 0.0
    %131 = vmatpush1.msra.mxu0 0.0
    %132 = vmatprep.subr.mxu0 0.0
    %133 = vmatpush1.msra.mxu0 0.0
    %134 = vmatprep.mubr.f32.mxu0 0.0
    %135 = vmatmul.mubr.f32.gmra.mrb[0].mxu0 %v40
    %v136 = vpop.f32.mrb[0].mxu0
    %v137 = vadd.f32 %v69, %v136
    %v138 = vpop.f32.mrb[0].mxu0
    %139 = vmatprep.mubr.f32.mxu0 0.0
    %140 = vmatmul.mubr.f32.gmra.mrb[0].mxu0 %v41
    %v141 = vpop.f32.mrb[0].mxu0
    %v142 = vadd.f32 %v69, %v141
    %v143 = vpop.f32.mrb[0].mxu0
    %144 = vmatprep.mubr.f32.mxu0 0.0
    %145 = vmatmul.mubr.f32.gmra.mrb[0].mxu0 %v42
    %v146 = vpop.f32.mrb[0].mxu0
    %v147 = vadd.f32 %v69, %v146
    %v148 = vpop.f32.mrb[0].mxu0
    %149 = vmatprep.mubr.f32.mxu0 0.0
    %150 = vmatmul.mubr.f32.gmra.mrb[0].mxu0 %v43
    %v151 = vpop.f32.mrb[0].mxu0
    %v152 = vadd.f32 %v69, %v151
    %v153 = vpop.f32.mrb[0].mxu0
    %154 = vmatprep.mubr.f32.mxu0 0.0
    %155 = vmatmul.mubr.f32.gmra.mrb[0].mxu0 %v44
    %v156 = vpop.f32.mrb[0].mxu0
    %v157 = vadd.f32 %v69, %v156
    %v158 = vpop.f32.mrb[0].mxu0
    %159 = vmatprep.mubr.f32.mxu0 0.0
    %160 = vmatmul.mubr.f32.gmra.mrb[0].mxu0 %v45
    %v161 = vpop.f32.mrb[0].mxu0
    %v162 = vadd.f32 %v69, %v161
    %v163 = vpop.f32.mrb[0].mxu0
    %164 = vmatprep.mubr.f32.mxu0 0.0
    %165 = vmatmul.mubr.f32.gmra.mrb[0].mxu0 %v46
    %v166 = vpop.f32.mrb[0].mxu0
    %v167 = vadd.f32 %v69, %v166
    %v168 = vpop.f32.mrb[0].mxu0
    %169 = vmatprep.mubr.f32.mxu0 0.0
    %170 = vmatmul.mubr.f32.gmra.mrb[0].mxu0 %v47
    %v171 = vpop.f32.mrb[0].mxu0
    %v172 = vadd.f32 %v69, %v171
    %v173 = vpop.f32.mrb[0].mxu0
    %174 = vmatprep.mubr.f32.mxu0 0.0
    %175 = vmatmul.mubr.f32.gmra.mrb[0].mxu0 %v48
    %v176 = vpop.f32.mrb[0].mxu0
    %v177 = vadd.f32 %v69, %v176
    %v178 = vpop.f32.mrb[0].mxu0
    %179 = vdwg.mxu0
    %v180 = vtanh.pop %v137
    %v181 = vtanh.pop %v142
    %v182 = vtanh.pop %v147
    %v183 = vtanh.pop %v152
    %v184 = vtanh.pop %v157
    %v185 = vtanh.pop %v162
    %v186 = vtanh.pop %v167
    %v187 = vtanh.pop %v172
    %v188 = vtanh.pop %v177
    %s189 = scalar_lea.vmem [#allocation5], 136
    %v190 = vld [vmem:[%s189] sm:$0xff]
    %v191 = vld [vmem:[%s189 + $0x8] sm:$0xff]
    %v192 = vld [vmem:[%s189 + $0x10] sm:$0xff]
    %v193 = vld [vmem:[%s189 + $0x18] sm:$0xff]
    %v194 = vld [vmem:[%s189 + $0x20] sm:$0xff]
    %v195 = vld [vmem:[%s189 + $0x28] sm:$0xff]
    %v196 = vld [vmem:[%s189 + $0x30] sm:$0xff]
    %v197 = vld [vmem:[%s189 + $0x38] sm:$0xff]
    %v198 = vld [vmem:[%s189 + $0x40] sm:$0xff]
    %v199 = vld [vmem:[%s189 + $0x48] sm:$0xff]
    %v200 = vld [vmem:[%s189 + $0x50] sm:$0xff]
    %v201 = vld [vmem:[%s189 + $0x58] sm:$0xff]
    %v202 = vld [vmem:[%s189 + $0x60] sm:$0xff]
    %v203 = vld [vmem:[%s189 + $0x68] sm:$0xff]
    %v204 = vld [vmem:[%s189 + $0x70] sm:$0xff]
    %v205 = vld [vmem:[%s189 + $0x78] sm:$0xff]
    %v206 = vld [vmem:[%s189 + $0x80] sm:$0xff]
    %v207 = vlaneseq
    %v208 = vshrl.u32 %v207, 7
    %v209 = vsub.s32 0, %v208
    %v210 = vrot.slane %v206, %v209
    %211 = vmatprep.subr.mxu0 0.0
    %212 = vmatpush1.msra.mxu0 %v190
    %213 = vmatprep.subr.mxu0 0.0
    %214 = vmatpush1.msra.mxu0 %v191
    %215 = vmatprep.subr.mxu0 0.0
    %216 = vmatpush1.msra.mxu0 %v192
    %217 = vmatprep.subr.mxu0 0.0
    %218 = vmatpush1.msra.mxu0 %v193
    %219 = vmatprep.subr.mxu0 0.0
    %220 = vmatpush1.msra.mxu0 %v194
    %221 = vmatprep.subr.mxu0 0.0
    %222 = vmatpush1.msra.mxu0 %v195
    %223 = vmatprep.subr.mxu0 0.0
    %224 = vmatpush1.msra.mxu0 %v196
    %225 = vmatprep.subr.mxu0 0.0
    %226 = vmatpush1.msra.mxu0 %v197
    %227 = vmatprep.subr.mxu0 0.0
    %228 = vmatpush1.msra.mxu0 %v198
    %229 = vmatprep.subr.mxu0 0.0
    %230 = vmatpush1.msra.mxu0 %v199
    %231 = vmatprep.subr.mxu0 0.0
    %232 = vmatpush1.msra.mxu0 %v200
    %233 = vmatprep.subr.mxu0 0.0
    %234 = vmatpush1.msra.mxu0 %v201
    %235 = vmatprep.subr.mxu0 0.0
    %236 = vmatpush1.msra.mxu0 %v202
    %237 = vmatprep.subr.mxu0 0.0
    %238 = vmatpush1.msra.mxu0 %v203
    %239 = vmatprep.subr.mxu0 0.0
    %240 = vmatpush1.msra.mxu0 %v204
    %241 = vmatprep.subr.mxu0 0.0
    %242 = vmatpush1.msra.mxu0 %v205
    %243 = vmatprep.subr.mxu0 0.0
    %244 = vmatpush1.msra.mxu0 0.0
    %245 = vmatprep.subr.mxu0 0.0
    %246 = vmatpush1.msra.mxu0 0.0
    %247 = vmatprep.subr.mxu0 0.0
    %248 = vmatpush1.msra.mxu0 0.0
    %249 = vmatprep.subr.mxu0 0.0
    %250 = vmatpush1.msra.mxu0 0.0
    %251 = vmatprep.subr.mxu0 0.0
    %252 = vmatpush1.msra.mxu0 0.0
    %253 = vmatprep.subr.mxu0 0.0
    %254 = vmatpush1.msra.mxu0 0.0
    %255 = vmatprep.subr.mxu0 0.0
    %256 = vmatpush1.msra.mxu0 0.0
    %257 = vmatprep.subr.mxu0 0.0
    %258 = vmatpush1.msra.mxu0 0.0
    %259 = vmatprep.subr.mxu0 0.0
    %260 = vmatpush1.msra.mxu0 0.0
    %261 = vmatprep.subr.mxu0 0.0
    %262 = vmatpush1.msra.mxu0 0.0
    %263 = vmatprep.subr.mxu0 0.0
    %264 = vmatpush1.msra.mxu0 0.0
    %265 = vmatprep.subr.mxu0 0.0
    %266 = vmatpush1.msra.mxu0 0.0
    %267 = vmatprep.subr.mxu0 0.0
    %268 = vmatpush1.msra.mxu0 0.0
    %269 = vmatprep.subr.mxu0 0.0
    %270 = vmatpush1.msra.mxu0 0.0
    %271 = vmatprep.subr.mxu0 0.0
    %272 = vmatpush1.msra.mxu0 0.0
    %273 = vmatprep.subr.mxu0 0.0
    %274 = vmatpush1.msra.mxu0 0.0
    %275 = vmatprep.mubr.f32.mxu0 0.0
    %276 = vmatmul.mubr.f32.gmra.mrb[0].mxu0 %v180
    %v277 = vpop.f32.mrb[0].mxu0
    %v278 = vadd.f32 %v210, %v277
    %v279 = vpop.f32.mrb[0].mxu0
    %280 = vmatprep.mubr.f32.mxu0 0.0
    %281 = vmatmul.mubr.f32.gmra.mrb[0].mxu0 %v181
    %v282 = vpop.f32.mrb[0].mxu0
    %v283 = vadd.f32 %v210, %v282
    %v284 = vpop.f32.mrb[0].mxu0
    %285 = vmatprep.mubr.f32.mxu0 0.0
    %286 = vmatmul.mubr.f32.gmra.mrb[0].mxu0 %v182
    %v287 = vpop.f32.mrb[0].mxu0
    %v288 = vadd.f32 %v210, %v287
    %v289 = vpop.f32.mrb[0].mxu0
    %290 = vmatprep.mubr.f32.mxu0 0.0
    %291 = vmatmul.mubr.f32.gmra.mrb[0].mxu0 %v183
    %v292 = vpop.f32.mrb[0].mxu0
    %v293 = vadd.f32 %v210, %v292
    %v294 = vpop.f32.mrb[0].mxu0
    %295 = vmatprep.mubr.f32.mxu0 0.0
    %296 = vmatmul.mubr.f32.gmra.mrb[0].mxu0 %v184
    %v297 = vpop.f32.mrb[0].mxu0
    %v298 = vadd.f32 %v210, %v297
    %v299 = vpop.f32.mrb[0].mxu0
    %300 = vmatprep.mubr.f32.mxu0 0.0
    %301 = vmatmul.mubr.f32.gmra.mrb[0].mxu0 %v185
    %v302 = vpop.f32.mrb[0].mxu0
    %v303 = vadd.f32 %v210, %v302
    %v304 = vpop.f32.mrb[0].mxu0
    %305 = vmatprep.mubr.f32.mxu0 0.0
    %306 = vmatmul.mubr.f32.gmra.mrb[0].mxu0 %v186
    %v307 = vpop.f32.mrb[0].mxu0
    %v308 = vadd.f32 %v210, %v307
    %v309 = vpop.f32.mrb[0].mxu0
    %310 = vmatprep.mubr.f32.mxu0 0.0
    %311 = vmatmul.mubr.f32.gmra.mrb[0].mxu0 %v187
    %v312 = vpop.f32.mrb[0].mxu0
    %v313 = vadd.f32 %v210, %v312
    %v314 = vpop.f32.mrb[0].mxu0
    %315 = vmatprep.mubr.f32.mxu0 0.0
    %316 = vmatmul.mubr.f32.gmra.mrb[0].mxu0 %v188
    %v317 = vpop.f32.mrb[0].mxu0
    %v318 = vadd.f32 %v210, %v317
    %v319 = vpop.f32.mrb[0].mxu0
    %320 = vdwg.mxu0
    %v321 = vtanh.pop %v278
    %v322 = vtanh.pop %v283
    %v323 = vtanh.pop %v288
    %v324 = vtanh.pop %v293
    %v325 = vtanh.pop %v298
    %v326 = vtanh.pop %v303
    %v327 = vtanh.pop %v308
    %v328 = vtanh.pop %v313
    %v329 = vtanh.pop %v318
    %s330 = scalar_lea.vmem [#allocation5], 272
    %v331 = vld [vmem:[%s330] sm:$0xff]
    %v332 = vld [vmem:[%s330 + $0x8] sm:$0xff]
    %v333 = vld [vmem:[%s330 + $0x10] sm:$0xff]
    %v334 = vld [vmem:[%s330 + $0x18] sm:$0xff]
    %v335 = vld [vmem:[%s330 + $0x20] sm:$0xff]
    %v336 = vld [vmem:[%s330 + $0x28] sm:$0xff]
    %v337 = vld [vmem:[%s330 + $0x30] sm:$0xff]
    %v338 = vld [vmem:[%s330 + $0x38] sm:$0xff]
    %v339 = vld [vmem:[%s330 + $0x40] sm:$0xff]
    %v340 = vld [vmem:[%s330 + $0x48] sm:$0xff]
    %v341 = vld [vmem:[%s330 + $0x50] sm:$0xff]
    %v342 = vld [vmem:[%s330 + $0x58] sm:$0xff]
    %v343 = vld [vmem:[%s330 + $0x60] sm:$0xff]
    %v344 = vld [vmem:[%s330 + $0x68] sm:$0xff]
    %v345 = vld [vmem:[%s330 + $0x70] sm:$0xff]
    %v346 = vld [vmem:[%s330 + $0x78] sm:$0xff]
    %v347 = vld [vmem:[%s330 + $0x80] sm:$0xff]
    %v348 = vlaneseq
    %v349 = vshrl.u32 %v348, 7
    %v350 = vsub.s32 0, %v349
    %v351 = vrot.slane %v347, %v350
    %352 = vmatprep.subr.mxu0 0.0
    %353 = vmatpush1.msra.mxu0 %v331
    %354 = vmatprep.subr.mxu0 0.0
    %355 = vmatpush1.msra.mxu0 %v332
    %356 = vmatprep.subr.mxu0 0.0
    %357 = vmatpush1.msra.mxu0 %v333
    %358 = vmatprep.subr.mxu0 0.0
    %359 = vmatpush1.msra.mxu0 %v334
    %360 = vmatprep.subr.mxu0 0.0
    %361 = vmatpush1.msra.mxu0 %v335
    %362 = vmatprep.subr.mxu0 0.0
    %363 = vmatpush1.msra.mxu0 %v336
    %364 = vmatprep.subr.mxu0 0.0
    %365 = vmatpush1.msra.mxu0 %v337
    %366 = vmatprep.subr.mxu0 0.0
    %367 = vmatpush1.msra.mxu0 %v338
    %368 = vmatprep.subr.mxu0 0.0
    %369 = vmatpush1.msra.mxu0 %v339
    %370 = vmatprep.subr.mxu0 0.0
    %371 = vmatpush1.msra.mxu0 %v340
    %372 = vmatprep.subr.mxu0 0.0
    %373 = vmatpush1.msra.mxu0 %v341
    %374 = vmatprep.subr.mxu0 0.0
    %375 = vmatpush1.msra.mxu0 %v342
    %376 = vmatprep.subr.mxu0 0.0
    %377 = vmatpush1.msra.mxu0 %v343
    %378 = vmatprep.subr.mxu0 0.0
    %379 = vmatpush1.msra.mxu0 %v344
    %380 = vmatprep.subr.mxu0 0.0
    %381 = vmatpush1.msra.mxu0 %v345
    %382 = vmatprep.subr.mxu0 0.0
    %383 = vmatpush1.msra.mxu0 %v346
    %384 = vmatprep.subr.mxu0 0.0
    %385 = vmatpush1.msra.mxu0 0.0
    %386 = vmatprep.subr.mxu0 0.0
    %387 = vmatpush1.msra.mxu0 0.0
    %388 = vmatprep.subr.mxu0 0.0
    %389 = vmatpush1.msra.mxu0 0.0
    %390 = vmatprep.subr.mxu0 0.0
    %391 = vmatpush1.msra.mxu0 0.0
    %392 = vmatprep.subr.mxu0 0.0
    %393 = vmatpush1.msra.mxu0 0.0
    %394 = vmatprep.subr.mxu0 0.0
    %395 = vmatpush1.msra.mxu0 0.0
    %396 = vmatprep.subr.mxu0 0.0
    %397 = vmatpush1.msra.mxu0 0.0
    %398 = vmatprep.subr.mxu0 0.0
    %399 = vmatpush1.msra.mxu0 0.0
    %400 = vmatprep.subr.mxu0 0.0
    %401 = vmatpush1.msra.mxu0 0.0
    %402 = vmatprep.subr.mxu0 0.0
    %403 = vmatpush1.msra.mxu0 0.0
    %404 = vmatprep.subr.mxu0 0.0
    %405 = vmatpush1.msra.mxu0 0.0
    %406 = vmatprep.subr.mxu0 0.0
    %407 = vmatpush1.msra.mxu0 0.0
    %408 = vmatprep.subr.mxu0 0.0
    %409 = vmatpush1.msra.mxu0 0.0
    %410 = vmatprep.subr.mxu0 0.0
    %411 = vmatpush1.msra.mxu0 0.0
    %412 = vmatprep.subr.mxu0 0.0
    %413 = vmatpush1.msra.mxu0 0.0
    %414 = vmatprep.subr.mxu0 0.0
    %415 = vmatpush1.msra.mxu0 0.0
    %416 = vmatprep.mubr.f32.mxu0 0.0
    %417 = vmatmul.mubr.f32.gmra.mrb[0].mxu0 %v321
    %v418 = vpop.f32.mrb[0].mxu0
    %v419 = vadd.f32 %v351, %v418
    %v420 = vpop.f32.mrb[0].mxu0
    %421 = vmatprep.mubr.f32.mxu0 0.0
    %422 = vmatmul.mubr.f32.gmra.mrb[0].mxu0 %v322
    %v423 = vpop.f32.mrb[0].mxu0
    %v424 = vadd.f32 %v351, %v423
    %v425 = vpop.f32.mrb[0].mxu0
    %426 = vmatprep.mubr.f32.mxu0 0.0
    %427 = vmatmul.mubr.f32.gmra.mrb[0].mxu0 %v323
    %v428 = vpop.f32.mrb[0].mxu0
    %v429 = vadd.f32 %v351, %v428
    %v430 = vpop.f32.mrb[0].mxu0
    %431 = vmatprep.mubr.f32.mxu0 0.0
    %432 = vmatmul.mubr.f32.gmra.mrb[0].mxu0 %v324
    %v433 = vpop.f32.mrb[0].mxu0
    %v434 = vadd.f32 %v351, %v433
    %v435 = vpop.f32.mrb[0].mxu0
    %436 = vmatprep.mubr.f32.mxu0 0.0
    %437 = vmatmul.mubr.f32.gmra.mrb[0].mxu0 %v325
    %v438 = vpop.f32.mrb[0].mxu0
    %v439 = vadd.f32 %v351, %v438
    %v440 = vpop.f32.mrb[0].mxu0
    %441 = vmatprep.mubr.f32.mxu0 0.0
    %442 = vmatmul.mubr.f32.gmra.mrb[0].mxu0 %v326
    %v443 = vpop.f32.mrb[0].mxu0
    %v444 = vadd.f32 %v351, %v443
    %v445 = vpop.f32.mrb[0].mxu0
    %446 = vmatprep.mubr.f32.mxu0 0.0
    %447 = vmatmul.mubr.f32.gmra.mrb[0].mxu0 %v327
    %v448 = vpop.f32.mrb[0].mxu0
    %v449 = vadd.f32 %v351, %v448
    %v450 = vpop.f32.mrb[0].mxu0
    %451 = vmatprep.mubr.f32.mxu0 0.0
    %452 = vmatmul.mubr.f32.gmra.mrb[0].mxu0 %v328
    %v453 = vpop.f32.mrb[0].mxu0
    %v454 = vadd.f32 %v351, %v453
    %v455 = vpop.f32.mrb[0].mxu0
    %456 = vmatprep.mubr.f32.mxu0 0.0
    %457 = vmatmul.mubr.f32.gmra.mrb[0].mxu0 %v329
    %v458 = vpop.f32.mrb[0].mxu0
    %v459 = vadd.f32 %v351, %v458
    %v460 = vpop.f32.mrb[0].mxu0
    %461 = vdwg.mxu0
    %v462 = vtanh.pop %v419
    %v463 = vtanh.pop %v424
    %v464 = vtanh.pop %v429
    %v465 = vtanh.pop %v434
    %v466 = vtanh.pop %v439
    %v467 = vtanh.pop %v444
    %v468 = vtanh.pop %v449
    %v469 = vtanh.pop %v454
    %v470 = vtanh.pop %v459
    %s471 = scalar_lea.vmem [#allocation5], 408
    %v472 = vld [vmem:[%s471] sm:$0xff]
    %v473 = vld [vmem:[%s471 + $0x8] sm:$0xff]
    %v474 = vld [vmem:[%s471 + $0x10] sm:$0xff]
    %v475 = vld [vmem:[%s471 + $0x18] sm:$0xff]
    %v476 = vld [vmem:[%s471 + $0x20] sm:$0xff]
    %v477 = vld [vmem:[%s471 + $0x28] sm:$0xff]
    %v478 = vld [vmem:[%s471 + $0x30] sm:$0xff]
    %v479 = vld [vmem:[%s471 + $0x38] sm:$0xff]
    %v480 = vld [vmem:[%s471 + $0x40] sm:$0xff]
    %v481 = vld [vmem:[%s471 + $0x48] sm:$0xff]
    %v482 = vld [vmem:[%s471 + $0x50] sm:$0xff]
    %v483 = vld [vmem:[%s471 + $0x58] sm:$0xff]
    %v484 = vld [vmem:[%s471 + $0x60] sm:$0xff]
    %v485 = vld [vmem:[%s471 + $0x68] sm:$0xff]
    %v486 = vld [vmem:[%s471 + $0x70] sm:$0xff]
    %v487 = vld [vmem:[%s471 + $0x78] sm:$0xff]
    %v488 = vld [vmem:[%s471 + $0x80] sm:$0xff]
    %v489 = vlaneseq
    %v490 = vshrl.u32 %v489, 7
    %v491 = vsub.s32 0, %v490
    %v492 = vrot.slane %v488, %v491
    %493 = vmatprep.subr.mxu0 0.0
    %494 = vmatpush1.msra.mxu0 %v472
    %495 = vmatprep.subr.mxu0 0.0
    %496 = vmatpush1.msra.mxu0 %v473
    %497 = vmatprep.subr.mxu0 0.0
    %498 = vmatpush1.msra.mxu0 %v474
    %499 = vmatprep.subr.mxu0 0.0
    %500 = vmatpush1.msra.mxu0 %v475
    %501 = vmatprep.subr.mxu0 0.0
    %502 = vmatpush1.msra.mxu0 %v476
    %503 = vmatprep.subr.mxu0 0.0
    %504 = vmatpush1.msra.mxu0 %v477
    %505 = vmatprep.subr.mxu0 0.0
    %506 = vmatpush1.msra.mxu0 %v478
    %507 = vmatprep.subr.mxu0 0.0
    %508 = vmatpush1.msra.mxu0 %v479
    %509 = vmatprep.subr.mxu0 0.0
    %510 = vmatpush1.msra.mxu0 %v480
    %511 = vmatprep.subr.mxu0 0.0
    %512 = vmatpush1.msra.mxu0 %v481
    %513 = vmatprep.subr.mxu0 0.0
    %514 = vmatpush1.msra.mxu0 %v482
    %515 = vmatprep.subr.mxu0 0.0
    %516 = vmatpush1.msra.mxu0 %v483
    %517 = vmatprep.subr.mxu0 0.0
    %518 = vmatpush1.msra.mxu0 %v484
    %519 = vmatprep.subr.mxu0 0.0
    %520 = vmatpush1.msra.mxu0 %v485
    %521 = vmatprep.subr.mxu0 0.0
    %522 = vmatpush1.msra.mxu0 %v486
    %523 = vmatprep.subr.mxu0 0.0
    %524 = vmatpush1.msra.mxu0 %v487
    %525 = vmatprep.subr.mxu0 0.0
    %526 = vmatpush1.msra.mxu0 0.0
    %527 = vmatprep.subr.mxu0 0.0
    %528 = vmatpush1.msra.mxu0 0.0
    %529 = vmatprep.subr.mxu0 0.0
    %530 = vmatpush1.msra.mxu0 0.0
    %531 = vmatprep.subr.mxu0 0.0
    %532 = vmatpush1.msra.mxu0 0.0
    %533 = vmatprep.subr.mxu0 0.0
    %534 = vmatpush1.msra.mxu0 0.0
    %535 = vmatprep.subr.mxu0 0.0
    %536 = vmatpush1.msra.mxu0 0.0
    %537 = vmatprep.subr.mxu0 0.0
    %538 = vmatpush1.msra.mxu0 0.0
    %539 = vmatprep.subr.mxu0 0.0
    %540 = vmatpush1.msra.mxu0 0.0
    %541 = vmatprep.subr.mxu0 0.0
    %542 = vmatpush1.msra.mxu0 0.0
    %543 = vmatprep.subr.mxu0 0.0
    %544 = vmatpush1.msra.mxu0 0.0
    %545 = vmatprep.subr.mxu0 0.0
    %546 = vmatpush1.msra.mxu0 0.0
    %547 = vmatprep.subr.mxu0 0.0
    %548 = vmatpush1.msra.mxu0 0.0
    %549 = vmatprep.subr.mxu0 0.0
    %550 = vmatpush1.msra.mxu0 0.0
    %551 = vmatprep.subr.mxu0 0.0
    %552 = vmatpush1.msra.mxu0 0.0
    %553 = vmatprep.subr.mxu0 0.0
    %554 = vmatpush1.msra.mxu0 0.0
    %555 = vmatprep.subr.mxu0 0.0
    %556 = vmatpush1.msra.mxu0 0.0
    %557 = vmatprep.mubr.f32.mxu0 0.0
    %558 = vmatmul.mubr.f32.gmra.mrb[0].mxu0 %v462
    %v559 = vpop.f32.mrb[0].mxu0
    %v560 = vadd.f32 %v492, %v559
    %v561 = vpop.f32.mrb[0].mxu0
    %562 = vmatprep.mubr.f32.mxu0 0.0
    %563 = vmatmul.mubr.f32.gmra.mrb[0].mxu0 %v463
    %v564 = vpop.f32.mrb[0].mxu0
    %v565 = vadd.f32 %v492, %v564
    %v566 = vpop.f32.mrb[0].mxu0
    %567 = vmatprep.mubr.f32.mxu0 0.0
    %568 = vmatmul.mubr.f32.gmra.mrb[0].mxu0 %v464
    %v569 = vpop.f32.mrb[0].mxu0
    %v570 = vadd.f32 %v492, %v569
    %v571 = vpop.f32.mrb[0].mxu0
    %572 = vmatprep.mubr.f32.mxu0 0.0
    %573 = vmatmul.mubr.f32.gmra.mrb[0].mxu0 %v465
    %v574 = vpop.f32.mrb[0].mxu0
    %v575 = vadd.f32 %v492, %v574
    %v576 = vpop.f32.mrb[0].mxu0
    %577 = vmatprep.mubr.f32.mxu0 0.0
    %578 = vmatmul.mubr.f32.gmra.mrb[0].mxu0 %v466
    %v579 = vpop.f32.mrb[0].mxu0
    %v580 = vadd.f32 %v492, %v579
    %v581 = vpop.f32.mrb[0].mxu0
    %582 = vmatprep.mubr.f32.mxu0 0.0
    %583 = vmatmul.mubr.f32.gmra.mrb[0].mxu0 %v467
    %v584 = vpop.f32.mrb[0].mxu0
    %v585 = vadd.f32 %v492, %v584
    %v586 = vpop.f32.mrb[0].mxu0
    %587 = vmatprep.mubr.f32.mxu0 0.0
    %588 = vmatmul.mubr.f32.gmra.mrb[0].mxu0 %v468
    %v589 = vpop.f32.mrb[0].mxu0
    %v590 = vadd.f32 %v492, %v589
    %v591 = vpop.f32.mrb[0].mxu0
    %592 = vmatprep.mubr.f32.mxu0 0.0
    %593 = vmatmul.mubr.f32.gmra.mrb[0].mxu0 %v469
    %v594 = vpop.f32.mrb[0].mxu0
    %v595 = vadd.f32 %v492, %v594
    %v596 = vpop.f32.mrb[0].mxu0
    %597 = vmatprep.mubr.f32.mxu0 0.0
    %598 = vmatmul.mubr.f32.gmra.mrb[0].mxu0 %v470
    %v599 = vpop.f32.mrb[0].mxu0
    %v600 = vadd.f32 %v492, %v599
    %v601 = vpop.f32.mrb[0].mxu0
    %602 = vdwg.mxu0
    %603 = vst [vmem:[#allocation7] sm:$0xff] %v560
    %604 = vst [vmem:[#allocation7 + $0x8] sm:$0xff] %v565
    %605 = vst [vmem:[#allocation7 + $0x10] sm:$0xff] %v570
    %606 = vst [vmem:[#allocation7 + $0x18] sm:$0xff] %v575
    %607 = vst [vmem:[#allocation7 + $0x20] sm:$0xff] %v580
    %608 = vst [vmem:[#allocation7 + $0x28] sm:$0xff] %v585
    %609 = vst [vmem:[#allocation7 + $0x30] sm:$0xff] %v590
    %610 = vst [vmem:[#allocation7 + $0x38] sm:$0xff] %v595
    %611 = vst [vmem:[#allocation7 + $0x40] sm:$0xff] %v600
    // Predicated region
    $region18: #{tpu_custom_call.1} parent=1 // pred_check
      _
    $region19: #{tpu_custom_call.1} parent=1 // pred_check_branch
      %613 = sbr.rel (0) target = $region21
    $region20: #{tpu_custom_call.1} parent=1 // pred_region
      %s615 = ssub.s32 1152, 1152
      %616 = vsyncadd [#allocation4], %s615
      %s617 = sshll.u32 [#allocation7], 4
      %s618 = int_to_ptr.vmem [resolvable:$true] %s617
      %623 = dma.vmem_to_hbm [thread:$0]  %s618, 1152, %s2, [#allocation4], 128, 128, 8
    $region21: #{tpu_custom_call.1} parent=1 // pred_fallthru
      _
    // Predicated region
    $region22: #{tpu_custom_call.1} parent=1 // pred_check
      _
    $region23: #{tpu_custom_call.1} parent=1 // pred_check_branch
      %625 = sbr.rel (0) target = $region25
    $region24: #{tpu_custom_call.1} parent=1 // pred_region
      %626 = dma.done [#allocation4], 1152
    $region25: #{tpu_custom_call.1} parent=1 // pred_fallthru
      _
    %627 = vsyncpa [#allocation3], 1
    %628 = vsyncpa [#allocation6], 1
    %629 = vsyncpa [#allocation4], 1

</llo_original>
